<compile_context>
chip_gen: v5e
topology: v5e:2x2
jax: 0.10.0
libtpu: 0.0.40
codegen_flags: <defaults>
</compile_context>

<pallas_src>
import jax
import jax.numpy as jnp
from jax.experimental import pallas as pl
from jax.experimental.pallas import tpu as pltpu

IN_FEATURES = 2
HIDDEN = 10
OUT_FEATURES = 2

LANES = 128
SUBLANES = 8
DEFAULT_TILE_ROWS = 512  # (512, 128) f32 slab per feature plane = 256 KiB


def simple_nn_kernel(w1_ref, b1_ref, w2_ref, b2_ref, x_ref, o_ref):
    """Fused fc1 -> ReLU -> fc2, computed transposed (batch on sublane/lane axes).

    x_ref : (2, TR, 128)  VMEM, one dense plane per input feature.
    o_ref : (2, TR, 128)  VMEM, one dense plane per output feature.
    w1_ref: (2, 10)  SMEM   b1_ref: (1, 10) SMEM
    w2_ref: (10, 2)  SMEM   b2_ref: (1, 2)  SMEM
    All compute is VPU broadcast-FMAs; the MXU is never touched.
    """
    hidden = w1_ref.shape[1]

    x0 = x_ref[0]  # (TR, 128) dense f32 slab
    x1 = x_ref[1]

    # fc2 bias folded in as the accumulator init (hoisted once, outside the loop).
    y0 = jnp.full(x0.shape, b2_ref[0, 0], dtype=jnp.float32)
    y1 = jnp.full(x0.shape, b2_ref[0, 1], dtype=jnp.float32)

    # Tiny contractions (K=2 then K=10) fully unrolled as VPU FMAs with SMEM scalars.
    for j in range(hidden):
        h = w1_ref[0, j] * x0 + w1_ref[1, j] * x1 + b1_ref[0, j]
        h = jnp.maximum(h, 0.0)  # ReLU
        y0 = y0 + w2_ref[j, 0] * h
        y1 = y1 + w2_ref[j, 1] * h

    o_ref[0] = y0.astype(o_ref.dtype)
    o_ref[1] = y1.astype(o_ref.dtype)


def simple_nn_forward(x, w1, b1, w2, b2, *, tile_rows=DEFAULT_TILE_ROWS):
    """x: (B, 2) float32 -> (B, 2) float32.  Weights stored as (in, out); biases (1, out)."""
    B, in_f = x.shape
    hidden = w1.shape[1]
    out_f = w2.shape[1]

    # --- batch-on-lanes layout -------------------------------------------------
    # View the batch as (rows, 128) lanes; rows rounded to a multiple of 8 sublanes
    # and of the tile, so every block is a dense (tr, 128) slab (no masked stores).
    tile_rows = max(SUBLANES, (tile_rows // SUBLANES) * SUBLANES)
    rows = pl.cdiv(B, LANES)
    rows = ((rows + SUBLANES - 1) // SUBLANES) * SUBLANES
    tr = min(tile_rows, rows)
    rows = ((rows + tr - 1) // tr) * tr
    b_pad = rows * LANES

    xT = jnp.pad(x.T.astype(jnp.float32), ((0, 0), (0, b_pad - B)))  # (2, B_pad)
    x3 = xT.reshape(in_f, rows, LANES)  # same row-major bytes, just a 3-D view

    grid = (rows // tr,)
    smem = pltpu.MemorySpace.SMEM

    y3 = pl.pallas_call(
        simple_nn_kernel,
        out_shape=jax.ShapeDtypeStruct((out_f, rows, LANES), jnp.float32),
        grid_spec=pltpu.PrefetchScalarGridSpec(
            num_scalar_prefetch=0,
            grid=grid,
            in_specs=[
                # Tiny weights/biases: resident in SMEM, constant index maps.
                pl.BlockSpec((in_f, hidden), lambda r: (0, 0), memory_space=smem),
                pl.BlockSpec((1, hidden), lambda r: (0, 0), memory_space=smem),
                pl.BlockSpec((hidden, out_f), lambda r: (0, 0), memory_space=smem),
                pl.BlockSpec((1, out_f), lambda r: (0, 0), memory_space=smem),
                # Activations: tile only the batch axis; blocks are lane/sublane dense.
                pl.BlockSpec((in_f, tr, LANES), lambda r: (0, r, 0)),
            ],
            out_specs=pl.BlockSpec((out_f, tr, LANES), lambda r: (0, r, 0)),
        ),
        compiler_params=pltpu.CompilerParams(
            # Batch loop is embarrassingly parallel: shards across v7x's 2 TCs,
            # measured neutral on single-TC v5e/v6e.
            dimension_semantics=("parallel",),
        ),
    )(w1, b1, w2, b2, x3)

    return y3.reshape(out_f, b_pad)[:, :B].T


def init_params(key):
    """Deterministic init mimicking PyTorch's default nn.Linear init
    (uniform in [-1/sqrt(fan_in), 1/sqrt(fan_in)])."""
    k1, k2, k3, k4 = jax.random.split(key, 4)
    bound1 = 1.0 / jnp.sqrt(IN_FEATURES)
    bound2 = 1.0 / jnp.sqrt(HIDDEN)
    # Stored as (in, out) so the math is x @ W + b (== torch's x @ W.T with W=(out,in)).
    w1 = jax.random.uniform(k1, (IN_FEATURES, HIDDEN), jnp.float32, -bound1, bound1)
    b1 = jax.random.uniform(k2, (1, HIDDEN), jnp.float32, -bound1, bound1)
    w2 = jax.random.uniform(k3, (HIDDEN, OUT_FEATURES), jnp.float32, -bound2, bound2)
    b2 = jax.random.uniform(k4, (1, OUT_FEATURES), jnp.float32, -bound2, bound2)
    return w1, b1, w2, b2


if __name__ == "__main__":
    key = jax.random.PRNGKey(0)
    k_params, k_x = jax.random.split(key)

    w1, b1, w2, b2 = init_params(k_params)

    batch = 8
    x = jax.random.normal(k_x, (batch, IN_FEATURES), dtype=jnp.float32)

    fwd = jax.jit(simple_nn_forward)
    y = fwd(x, w1, b1, w2, b2)
    y = jax.block_until_ready(y)

    # Pure-JAX reference check of forward semantics.
    h_ref = jnp.maximum(x @ w1 + b1, 0.0)
    y_ref = h_ref @ w2 + b2
    assert y.shape == (batch, OUT_FEATURES)
    assert jnp.allclose(y, y_ref, atol=1e-5), "mismatch vs reference"

    print("KERNEL_OK")
</pallas_src>

<mosaic_0001>
module attributes {stable_mosaic.version = 11 : i64} {
  func.func @simple_nn_kernel(%arg0: i32, %arg1: memref<2x10xf32, #tpu.memory_space<smem>>, %arg2: memref<1x10xf32, #tpu.memory_space<smem>>, %arg3: memref<10x2xf32, #tpu.memory_space<smem>>, %arg4: memref<1x2xf32, #tpu.memory_space<smem>>, %arg5: memref<2x8x128xf32, #tpu.memory_space<vmem>>, %arg6: memref<2x8x128xf32, #tpu.memory_space<vmem>>) attributes {dimension_semantics = [#tpu.dimension_semantics<parallel>], iteration_bounds = array<i64: 1>, scalar_prefetch = 0 : i64, scratch_operands = 0 : i64, tpu.core_type = #tpu.core_type<tc>, window_params = [{transform_indices = @transform_0, window_bounds = array<i64: 2, 10>}, {transform_indices = @transform_1, window_bounds = array<i64: 1, 10>}, {transform_indices = @transform_2, window_bounds = array<i64: 10, 2>}, {transform_indices = @transform_3, window_bounds = array<i64: 1, 2>}, {transform_indices = @transform_4, window_bounds = array<i64: 2, 8, 128>}, {transform_indices = @transform_5, window_bounds = array<i64: 2, 8, 128>}]} {
    %c0 = arith.constant 0 : index
    %c0_0 = arith.constant 0 : index
    %c0_1 = arith.constant 0 : index
    %0 = vector.load %arg5[%c0, %c0_0, %c0_1] : memref<2x8x128xf32, #tpu.memory_space<vmem>>, vector<1x8x128xf32>
    %1 = vector.shape_cast %0 : vector<1x8x128xf32> to vector<8x128xf32>
    %c1 = arith.constant 1 : index
    %c0_2 = arith.constant 0 : index
    %c0_3 = arith.constant 0 : index
    %2 = vector.load %arg5[%c1, %c0_2, %c0_3] : memref<2x8x128xf32, #tpu.memory_space<vmem>>, vector<1x8x128xf32>
    %3 = vector.shape_cast %2 : vector<1x8x128xf32> to vector<8x128xf32>
    %c0_4 = arith.constant 0 : index
    %c0_5 = arith.constant 0 : index
    %4 = memref.load %arg4[%c0_4, %c0_5] : memref<1x2xf32, #tpu.memory_space<smem>>
    %5 = vector.broadcast %4 : f32 to vector<8x128xf32>
    %c0_6 = arith.constant 0 : index
    %c1_7 = arith.constant 1 : index
    %6 = memref.load %arg4[%c0_6, %c1_7] : memref<1x2xf32, #tpu.memory_space<smem>>
    %7 = vector.broadcast %6 : f32 to vector<8x128xf32>
    %c0_8 = arith.constant 0 : index
    %c0_9 = arith.constant 0 : index
    %8 = memref.load %arg1[%c0_8, %c0_9] : memref<2x10xf32, #tpu.memory_space<smem>>
    %9 = vector.broadcast %8 : f32 to vector<8x128xf32>
    %10 = arith.mulf %9, %1 : vector<8x128xf32>
    %c1_10 = arith.constant 1 : index
    %c0_11 = arith.constant 0 : index
    %11 = memref.load %arg1[%c1_10, %c0_11] : memref<2x10xf32, #tpu.memory_space<smem>>
    %12 = vector.broadcast %11 : f32 to vector<8x128xf32>
    %13 = arith.mulf %12, %3 : vector<8x128xf32>
    %14 = arith.addf %10, %13 : vector<8x128xf32>
    %c0_12 = arith.constant 0 : index
    %c0_13 = arith.constant 0 : index
    %15 = memref.load %arg2[%c0_12, %c0_13] : memref<1x10xf32, #tpu.memory_space<smem>>
    %16 = vector.broadcast %15 : f32 to vector<8x128xf32>
    %17 = arith.addf %14, %16 : vector<8x128xf32>
    %cst = arith.constant 0.000000e+00 : f32
    %18 = vector.broadcast %cst : f32 to vector<8x128xf32>
    %19 = arith.maximumf %17, %18 : vector<8x128xf32>
    %c0_14 = arith.constant 0 : index
    %c0_15 = arith.constant 0 : index
    %20 = memref.load %arg3[%c0_14, %c0_15] : memref<10x2xf32, #tpu.memory_space<smem>>
    %21 = vector.broadcast %20 : f32 to vector<8x128xf32>
    %22 = arith.mulf %21, %19 : vector<8x128xf32>
    %23 = arith.addf %5, %22 : vector<8x128xf32>
    %c0_16 = arith.constant 0 : index
    %c1_17 = arith.constant 1 : index
    %24 = memref.load %arg3[%c0_16, %c1_17] : memref<10x2xf32, #tpu.memory_space<smem>>
    %25 = vector.broadcast %24 : f32 to vector<8x128xf32>
    %26 = arith.mulf %25, %19 : vector<8x128xf32>
    %27 = arith.addf %7, %26 : vector<8x128xf32>
    %c0_18 = arith.constant 0 : index
    %c1_19 = arith.constant 1 : index
    %28 = memref.load %arg1[%c0_18, %c1_19] : memref<2x10xf32, #tpu.memory_space<smem>>
    %29 = vector.broadcast %28 : f32 to vector<8x128xf32>
    %30 = arith.mulf %29, %1 : vector<8x128xf32>
    %c1_20 = arith.constant 1 : index
    %c1_21 = arith.constant 1 : index
    %31 = memref.load %arg1[%c1_20, %c1_21] : memref<2x10xf32, #tpu.memory_space<smem>>
    %32 = vector.broadcast %31 : f32 to vector<8x128xf32>
    %33 = arith.mulf %32, %3 : vector<8x128xf32>
    %34 = arith.addf %30, %33 : vector<8x128xf32>
    %c0_22 = arith.constant 0 : index
    %c1_23 = arith.constant 1 : index
    %35 = memref.load %arg2[%c0_22, %c1_23] : memref<1x10xf32, #tpu.memory_space<smem>>
    %36 = vector.broadcast %35 : f32 to vector<8x128xf32>
    %37 = arith.addf %34, %36 : vector<8x128xf32>
    %cst_24 = arith.constant 0.000000e+00 : f32
    %38 = vector.broadcast %cst_24 : f32 to vector<8x128xf32>
    %39 = arith.maximumf %37, %38 : vector<8x128xf32>
    %c1_25 = arith.constant 1 : index
    %c0_26 = arith.constant 0 : index
    %40 = memref.load %arg3[%c1_25, %c0_26] : memref<10x2xf32, #tpu.memory_space<smem>>
    %41 = vector.broadcast %40 : f32 to vector<8x128xf32>
    %42 = arith.mulf %41, %39 : vector<8x128xf32>
    %43 = arith.addf %23, %42 : vector<8x128xf32>
    %c1_27 = arith.constant 1 : index
    %c1_28 = arith.constant 1 : index
    %44 = memref.load %arg3[%c1_27, %c1_28] : memref<10x2xf32, #tpu.memory_space<smem>>
    %45 = vector.broadcast %44 : f32 to vector<8x128xf32>
    %46 = arith.mulf %45, %39 : vector<8x128xf32>
    %47 = arith.addf %27, %46 : vector<8x128xf32>
    %c0_29 = arith.constant 0 : index
    %c2 = arith.constant 2 : index
    %48 = memref.load %arg1[%c0_29, %c2] : memref<2x10xf32, #tpu.memory_space<smem>>
    %49 = vector.broadcast %48 : f32 to vector<8x128xf32>
    %50 = arith.mulf %49, %1 : vector<8x128xf32>
    %c1_30 = arith.constant 1 : index
    %c2_31 = arith.constant 2 : index
    %51 = memref.load %arg1[%c1_30, %c2_31] : memref<2x10xf32, #tpu.memory_space<smem>>
    %52 = vector.broadcast %51 : f32 to vector<8x128xf32>
    %53 = arith.mulf %52, %3 : vector<8x128xf32>
    %54 = arith.addf %50, %53 : vector<8x128xf32>
    %c0_32 = arith.constant 0 : index
    %c2_33 = arith.constant 2 : index
    %55 = memref.load %arg2[%c0_32, %c2_33] : memref<1x10xf32, #tpu.memory_space<smem>>
    %56 = vector.broadcast %55 : f32 to vector<8x128xf32>
    %57 = arith.addf %54, %56 : vector<8x128xf32>
    %cst_34 = arith.constant 0.000000e+00 : f32
    %58 = vector.broadcast %cst_34 : f32 to vector<8x128xf32>
    %59 = arith.maximumf %57, %58 : vector<8x128xf32>
    %c2_35 = arith.constant 2 : index
    %c0_36 = arith.constant 0 : index
    %60 = memref.load %arg3[%c2_35, %c0_36] : memref<10x2xf32, #tpu.memory_space<smem>>
    %61 = vector.broadcast %60 : f32 to vector<8x128xf32>
    %62 = arith.mulf %61, %59 : vector<8x128xf32>
    %63 = arith.addf %43, %62 : vector<8x128xf32>
    %c2_37 = arith.constant 2 : index
    %c1_38 = arith.constant 1 : index
    %64 = memref.load %arg3[%c2_37, %c1_38] : memref<10x2xf32, #tpu.memory_space<smem>>
    %65 = vector.broadcast %64 : f32 to vector<8x128xf32>
    %66 = arith.mulf %65, %59 : vector<8x128xf32>
    %67 = arith.addf %47, %66 : vector<8x128xf32>
    %c0_39 = arith.constant 0 : index
    %c3 = arith.constant 3 : index
    %68 = memref.load %arg1[%c0_39, %c3] : memref<2x10xf32, #tpu.memory_space<smem>>
    %69 = vector.broadcast %68 : f32 to vector<8x128xf32>
    %70 = arith.mulf %69, %1 : vector<8x128xf32>
    %c1_40 = arith.constant 1 : index
    %c3_41 = arith.constant 3 : index
    %71 = memref.load %arg1[%c1_40, %c3_41] : memref<2x10xf32, #tpu.memory_space<smem>>
    %72 = vector.broadcast %71 : f32 to vector<8x128xf32>
    %73 = arith.mulf %72, %3 : vector<8x128xf32>
    %74 = arith.addf %70, %73 : vector<8x128xf32>
    %c0_42 = arith.constant 0 : index
    %c3_43 = arith.constant 3 : index
    %75 = memref.load %arg2[%c0_42, %c3_43] : memref<1x10xf32, #tpu.memory_space<smem>>
    %76 = vector.broadcast %75 : f32 to vector<8x128xf32>
    %77 = arith.addf %74, %76 : vector<8x128xf32>
    %cst_44 = arith.constant 0.000000e+00 : f32
    %78 = vector.broadcast %cst_44 : f32 to vector<8x128xf32>
    %79 = arith.maximumf %77, %78 : vector<8x128xf32>
    %c3_45 = arith.constant 3 : index
    %c0_46 = arith.constant 0 : index
    %80 = memref.load %arg3[%c3_45, %c0_46] : memref<10x2xf32, #tpu.memory_space<smem>>
    %81 = vector.broadcast %80 : f32 to vector<8x128xf32>
    %82 = arith.mulf %81, %79 : vector<8x128xf32>
    %83 = arith.addf %63, %82 : vector<8x128xf32>
    %c3_47 = arith.constant 3 : index
    %c1_48 = arith.constant 1 : index
    %84 = memref.load %arg3[%c3_47, %c1_48] : memref<10x2xf32, #tpu.memory_space<smem>>
    %85 = vector.broadcast %84 : f32 to vector<8x128xf32>
    %86 = arith.mulf %85, %79 : vector<8x128xf32>
    %87 = arith.addf %67, %86 : vector<8x128xf32>
    %c0_49 = arith.constant 0 : index
    %c4 = arith.constant 4 : index
    %88 = memref.load %arg1[%c0_49, %c4] : memref<2x10xf32, #tpu.memory_space<smem>>
    %89 = vector.broadcast %88 : f32 to vector<8x128xf32>
    %90 = arith.mulf %89, %1 : vector<8x128xf32>
    %c1_50 = arith.constant 1 : index
    %c4_51 = arith.constant 4 : index
    %91 = memref.load %arg1[%c1_50, %c4_51] : memref<2x10xf32, #tpu.memory_space<smem>>
    %92 = vector.broadcast %91 : f32 to vector<8x128xf32>
    %93 = arith.mulf %92, %3 : vector<8x128xf32>
    %94 = arith.addf %90, %93 : vector<8x128xf32>
    %c0_52 = arith.constant 0 : index
    %c4_53 = arith.constant 4 : index
    %95 = memref.load %arg2[%c0_52, %c4_53] : memref<1x10xf32, #tpu.memory_space<smem>>
    %96 = vector.broadcast %95 : f32 to vector<8x128xf32>
    %97 = arith.addf %94, %96 : vector<8x128xf32>
    %cst_54 = arith.constant 0.000000e+00 : f32
    %98 = vector.broadcast %cst_54 : f32 to vector<8x128xf32>
    %99 = arith.maximumf %97, %98 : vector<8x128xf32>
    %c4_55 = arith.constant 4 : index
    %c0_56 = arith.constant 0 : index
    %100 = memref.load %arg3[%c4_55, %c0_56] : memref<10x2xf32, #tpu.memory_space<smem>>
    %101 = vector.broadcast %100 : f32 to vector<8x128xf32>
    %102 = arith.mulf %101, %99 : vector<8x128xf32>
    %103 = arith.addf %83, %102 : vector<8x128xf32>
    %c4_57 = arith.constant 4 : index
    %c1_58 = arith.constant 1 : index
    %104 = memref.load %arg3[%c4_57, %c1_58] : memref<10x2xf32, #tpu.memory_space<smem>>
    %105 = vector.broadcast %104 : f32 to vector<8x128xf32>
    %106 = arith.mulf %105, %99 : vector<8x128xf32>
    %107 = arith.addf %87, %106 : vector<8x128xf32>
    %c0_59 = arith.constant 0 : index
    %c5 = arith.constant 5 : index
    %108 = memref.load %arg1[%c0_59, %c5] : memref<2x10xf32, #tpu.memory_space<smem>>
    %109 = vector.broadcast %108 : f32 to vector<8x128xf32>
    %110 = arith.mulf %109, %1 : vector<8x128xf32>
    %c1_60 = arith.constant 1 : index
    %c5_61 = arith.constant 5 : index
    %111 = memref.load %arg1[%c1_60, %c5_61] : memref<2x10xf32, #tpu.memory_space<smem>>
    %112 = vector.broadcast %111 : f32 to vector<8x128xf32>
    %113 = arith.mulf %112, %3 : vector<8x128xf32>
    %114 = arith.addf %110, %113 : vector<8x128xf32>
    %c0_62 = arith.constant 0 : index
    %c5_63 = arith.constant 5 : index
    %115 = memref.load %arg2[%c0_62, %c5_63] : memref<1x10xf32, #tpu.memory_space<smem>>
    %116 = vector.broadcast %115 : f32 to vector<8x128xf32>
    %117 = arith.addf %114, %116 : vector<8x128xf32>
    %cst_64 = arith.constant 0.000000e+00 : f32
    %118 = vector.broadcast %cst_64 : f32 to vector<8x128xf32>
    %119 = arith.maximumf %117, %118 : vector<8x128xf32>
    %c5_65 = arith.constant 5 : index
    %c0_66 = arith.constant 0 : index
    %120 = memref.load %arg3[%c5_65, %c0_66] : memref<10x2xf32, #tpu.memory_space<smem>>
    %121 = vector.broadcast %120 : f32 to vector<8x128xf32>
    %122 = arith.mulf %121, %119 : vector<8x128xf32>
    %123 = arith.addf %103, %122 : vector<8x128xf32>
    %c5_67 = arith.constant 5 : index
    %c1_68 = arith.constant 1 : index
    %124 = memref.load %arg3[%c5_67, %c1_68] : memref<10x2xf32, #tpu.memory_space<smem>>
    %125 = vector.broadcast %124 : f32 to vector<8x128xf32>
    %126 = arith.mulf %125, %119 : vector<8x128xf32>
    %127 = arith.addf %107, %126 : vector<8x128xf32>
    %c0_69 = arith.constant 0 : index
    %c6 = arith.constant 6 : index
    %128 = memref.load %arg1[%c0_69, %c6] : memref<2x10xf32, #tpu.memory_space<smem>>
    %129 = vector.broadcast %128 : f32 to vector<8x128xf32>
    %130 = arith.mulf %129, %1 : vector<8x128xf32>
    %c1_70 = arith.constant 1 : index
    %c6_71 = arith.constant 6 : index
    %131 = memref.load %arg1[%c1_70, %c6_71] : memref<2x10xf32, #tpu.memory_space<smem>>
    %132 = vector.broadcast %131 : f32 to vector<8x128xf32>
    %133 = arith.mulf %132, %3 : vector<8x128xf32>
    %134 = arith.addf %130, %133 : vector<8x128xf32>
    %c0_72 = arith.constant 0 : index
    %c6_73 = arith.constant 6 : index
    %135 = memref.load %arg2[%c0_72, %c6_73] : memref<1x10xf32, #tpu.memory_space<smem>>
    %136 = vector.broadcast %135 : f32 to vector<8x128xf32>
    %137 = arith.addf %134, %136 : vector<8x128xf32>
    %cst_74 = arith.constant 0.000000e+00 : f32
    %138 = vector.broadcast %cst_74 : f32 to vector<8x128xf32>
    %139 = arith.maximumf %137, %138 : vector<8x128xf32>
    %c6_75 = arith.constant 6 : index
    %c0_76 = arith.constant 0 : index
    %140 = memref.load %arg3[%c6_75, %c0_76] : memref<10x2xf32, #tpu.memory_space<smem>>
    %141 = vector.broadcast %140 : f32 to vector<8x128xf32>
    %142 = arith.mulf %141, %139 : vector<8x128xf32>
    %143 = arith.addf %123, %142 : vector<8x128xf32>
    %c6_77 = arith.constant 6 : index
    %c1_78 = arith.constant 1 : index
    %144 = memref.load %arg3[%c6_77, %c1_78] : memref<10x2xf32, #tpu.memory_space<smem>>
    %145 = vector.broadcast %144 : f32 to vector<8x128xf32>
    %146 = arith.mulf %145, %139 : vector<8x128xf32>
    %147 = arith.addf %127, %146 : vector<8x128xf32>
    %c0_79 = arith.constant 0 : index
    %c7 = arith.constant 7 : index
    %148 = memref.load %arg1[%c0_79, %c7] : memref<2x10xf32, #tpu.memory_space<smem>>
    %149 = vector.broadcast %148 : f32 to vector<8x128xf32>
    %150 = arith.mulf %149, %1 : vector<8x128xf32>
    %c1_80 = arith.constant 1 : index
    %c7_81 = arith.constant 7 : index
    %151 = memref.load %arg1[%c1_80, %c7_81] : memref<2x10xf32, #tpu.memory_space<smem>>
    %152 = vector.broadcast %151 : f32 to vector<8x128xf32>
    %153 = arith.mulf %152, %3 : vector<8x128xf32>
    %154 = arith.addf %150, %153 : vector<8x128xf32>
    %c0_82 = arith.constant 0 : index
    %c7_83 = arith.constant 7 : index
    %155 = memref.load %arg2[%c0_82, %c7_83] : memref<1x10xf32, #tpu.memory_space<smem>>
    %156 = vector.broadcast %155 : f32 to vector<8x128xf32>
    %157 = arith.addf %154, %156 : vector<8x128xf32>
    %cst_84 = arith.constant 0.000000e+00 : f32
    %158 = vector.broadcast %cst_84 : f32 to vector<8x128xf32>
    %159 = arith.maximumf %157, %158 : vector<8x128xf32>
    %c7_85 = arith.constant 7 : index
    %c0_86 = arith.constant 0 : index
    %160 = memref.load %arg3[%c7_85, %c0_86] : memref<10x2xf32, #tpu.memory_space<smem>>
    %161 = vector.broadcast %160 : f32 to vector<8x128xf32>
    %162 = arith.mulf %161, %159 : vector<8x128xf32>
    %163 = arith.addf %143, %162 : vector<8x128xf32>
    %c7_87 = arith.constant 7 : index
    %c1_88 = arith.constant 1 : index
    %164 = memref.load %arg3[%c7_87, %c1_88] : memref<10x2xf32, #tpu.memory_space<smem>>
    %165 = vector.broadcast %164 : f32 to vector<8x128xf32>
    %166 = arith.mulf %165, %159 : vector<8x128xf32>
    %167 = arith.addf %147, %166 : vector<8x128xf32>
    %c0_89 = arith.constant 0 : index
    %c8 = arith.constant 8 : index
    %168 = memref.load %arg1[%c0_89, %c8] : memref<2x10xf32, #tpu.memory_space<smem>>
    %169 = vector.broadcast %168 : f32 to vector<8x128xf32>
    %170 = arith.mulf %169, %1 : vector<8x128xf32>
    %c1_90 = arith.constant 1 : index
    %c8_91 = arith.constant 8 : index
    %171 = memref.load %arg1[%c1_90, %c8_91] : memref<2x10xf32, #tpu.memory_space<smem>>
    %172 = vector.broadcast %171 : f32 to vector<8x128xf32>
    %173 = arith.mulf %172, %3 : vector<8x128xf32>
    %174 = arith.addf %170, %173 : vector<8x128xf32>
    %c0_92 = arith.constant 0 : index
    %c8_93 = arith.constant 8 : index
    %175 = memref.load %arg2[%c0_92, %c8_93] : memref<1x10xf32, #tpu.memory_space<smem>>
    %176 = vector.broadcast %175 : f32 to vector<8x128xf32>
    %177 = arith.addf %174, %176 : vector<8x128xf32>
    %cst_94 = arith.constant 0.000000e+00 : f32
    %178 = vector.broadcast %cst_94 : f32 to vector<8x128xf32>
    %179 = arith.maximumf %177, %178 : vector<8x128xf32>
    %c8_95 = arith.constant 8 : index
    %c0_96 = arith.constant 0 : index
    %180 = memref.load %arg3[%c8_95, %c0_96] : memref<10x2xf32, #tpu.memory_space<smem>>
    %181 = vector.broadcast %180 : f32 to vector<8x128xf32>
    %182 = arith.mulf %181, %179 : vector<8x128xf32>
    %183 = arith.addf %163, %182 : vector<8x128xf32>
    %c8_97 = arith.constant 8 : index
    %c1_98 = arith.constant 1 : index
    %184 = memref.load %arg3[%c8_97, %c1_98] : memref<10x2xf32, #tpu.memory_space<smem>>
    %185 = vector.broadcast %184 : f32 to vector<8x128xf32>
    %186 = arith.mulf %185, %179 : vector<8x128xf32>
    %187 = arith.addf %167, %186 : vector<8x128xf32>
    %c0_99 = arith.constant 0 : index
    %c9 = arith.constant 9 : index
    %188 = memref.load %arg1[%c0_99, %c9] : memref<2x10xf32, #tpu.memory_space<smem>>
    %189 = vector.broadcast %188 : f32 to vector<8x128xf32>
    %190 = arith.mulf %189, %1 : vector<8x128xf32>
    %c1_100 = arith.constant 1 : index
    %c9_101 = arith.constant 9 : index
    %191 = memref.load %arg1[%c1_100, %c9_101] : memref<2x10xf32, #tpu.memory_space<smem>>
    %192 = vector.broadcast %191 : f32 to vector<8x128xf32>
    %193 = arith.mulf %192, %3 : vector<8x128xf32>
    %194 = arith.addf %190, %193 : vector<8x128xf32>
    %c0_102 = arith.constant 0 : index
    %c9_103 = arith.constant 9 : index
    %195 = memref.load %arg2[%c0_102, %c9_103] : memref<1x10xf32, #tpu.memory_space<smem>>
    %196 = vector.broadcast %195 : f32 to vector<8x128xf32>
    %197 = arith.addf %194, %196 : vector<8x128xf32>
    %cst_104 = arith.constant 0.000000e+00 : f32
    %198 = vector.broadcast %cst_104 : f32 to vector<8x128xf32>
    %199 = arith.maximumf %197, %198 : vector<8x128xf32>
    %c9_105 = arith.constant 9 : index
    %c0_106 = arith.constant 0 : index
    %200 = memref.load %arg3[%c9_105, %c0_106] : memref<10x2xf32, #tpu.memory_space<smem>>
    %201 = vector.broadcast %200 : f32 to vector<8x128xf32>
    %202 = arith.mulf %201, %199 : vector<8x128xf32>
    %203 = arith.addf %183, %202 : vector<8x128xf32>
    %c9_107 = arith.constant 9 : index
    %c1_108 = arith.constant 1 : index
    %204 = memref.load %arg3[%c9_107, %c1_108] : memref<10x2xf32, #tpu.memory_space<smem>>
    %205 = vector.broadcast %204 : f32 to vector<8x128xf32>
    %206 = arith.mulf %205, %199 : vector<8x128xf32>
    %207 = arith.addf %187, %206 : vector<8x128xf32>
    %c0_109 = arith.constant 0 : index
    %c0_110 = arith.constant 0 : index
    %c0_111 = arith.constant 0 : index
    %208 = vector.load %arg6[%c0_109, %c0_110, %c0_111] : memref<2x8x128xf32, #tpu.memory_space<vmem>>, vector<1x8x128xf32>
    %209 = vector.shape_cast %208 : vector<1x8x128xf32> to vector<8x128xf32>
    %210 = vector.shape_cast %203 : vector<8x128xf32> to vector<1x8x128xf32>
    tpu.vector_store %arg6[%c0_109, %c0_110, %c0_111], %210 {strides = array<i32>} : memref<2x8x128xf32, #tpu.memory_space<vmem>>, vector<1x8x128xf32>,
    %c1_112 = arith.constant 1 : index
    %c0_113 = arith.constant 0 : index
    %c0_114 = arith.constant 0 : index
    %211 = vector.load %arg6[%c1_112, %c0_113, %c0_114] : memref<2x8x128xf32, #tpu.memory_space<vmem>>, vector<1x8x128xf32>
    %212 = vector.shape_cast %211 : vector<1x8x128xf32> to vector<8x128xf32>
    %213 = vector.shape_cast %207 : vector<8x128xf32> to vector<1x8x128xf32>
    tpu.vector_store %arg6[%c1_112, %c0_113, %c0_114], %213 {strides = array<i32>} : memref<2x8x128xf32, #tpu.memory_space<vmem>>, vector<1x8x128xf32>,
    return
  }
  func.func @transform_0(%arg0: i32) -> (i32, i32) {
    %c0_i32 = arith.constant 0 : i32
    %c0_i32_0 = arith.constant 0 : i32
    %c0_i32_1 = arith.constant 0 : i32
    return %c0_i32, %c0_i32_0 : i32, i32
  }
  func.func @transform_1(%arg0: i32) -> (i32, i32) {
    %c0_i32 = arith.constant 0 : i32
    %c0_i32_0 = arith.constant 0 : i32
    %c0_i32_1 = arith.constant 0 : i32
    return %c0_i32, %c0_i32_0 : i32, i32
  }
  func.func @transform_2(%arg0: i32) -> (i32, i32) {
    %c0_i32 = arith.constant 0 : i32
    %c0_i32_0 = arith.constant 0 : i32
    %c0_i32_1 = arith.constant 0 : i32
    return %c0_i32, %c0_i32_0 : i32, i32
  }
  func.func @transform_3(%arg0: i32) -> (i32, i32) {
    %c0_i32 = arith.constant 0 : i32
    %c0_i32_0 = arith.constant 0 : i32
    %c0_i32_1 = arith.constant 0 : i32
    return %c0_i32, %c0_i32_0 : i32, i32
  }
  func.func @transform_4(%arg0: i32) -> (i32, i32, i32) {
    %c0_i32 = arith.constant 0 : i32
    %c0_i32_0 = arith.constant 0 : i32
    %c0_i32_1 = arith.constant 0 : i32
    return %c0_i32, %arg0, %c0_i32_0 : i32, i32, i32
  }
  func.func @transform_5(%arg0: i32) -> (i32, i32, i32) {
    %c0_i32 = arith.constant 0 : i32
    %c0_i32_0 = arith.constant 0 : i32
    %c0_i32_1 = arith.constant 0 : i32
    return %c0_i32, %arg0, %c0_i32_0 : i32, i32, i32
  }
}

</mosaic_0001>

<llo_original>
// kernel: simple_nn_forward.1
$region0: #{simple_nn_forward.1}
  #allocation0 [shape = 'u32[]', space=smem, size = 0x4, offset = 0x4, fixed_abs, tag = 'smem constant byte address 0x4 - core index']
  #allocation1 [shape = 'u32[72,128]{1,0:T(1,128)}', space=vmem, size = 0x9000, scoped, tag = 'internal scratch']
  %s0 = inlined_call_operand.vmem [shape: f32[2,10], index: 0, kind: input, shape index: {}]
  %s1 = inlined_call_operand.vmem [shape: f32[1,10], index: 1, kind: input, shape index: {}]
  %s2 = inlined_call_operand.vmem [shape: f32[10,2], index: 2, kind: input, shape index: {}]
  %s3 = inlined_call_operand.vmem [shape: f32[1,2], index: 3, kind: input, shape index: {}]
  %s4 = inlined_call_operand.vmem [shape: f32[2,8,128], index: 4, kind: input, shape index: {}]
  %s5 = inlined_call_operand.vmem [shape: f32[2,8,128], index: 5, kind: output, shape index: {}]
  %s6 = sld [smem:[#allocation0]]
  $region46: #{simple_nn_forward.1} parent=0
    _
  %s8 = ssub.s32 1, %s6
  %s9 = scalar_select 0, %s8, %s6
  $region1: #{simple_nn_forward.1} parent=0
    #allocation2 [shape = 'u8[1024]{0}', space=smem, size = 0x400, scoped, tag = 'input window, operand 0, single buffered']
    #allocation3 [shape = 's32[1]{0}', space=sflag, size = 0x4, scoped, tag = 'scoped memory for simple_nn_forward.1']
    #allocation4 [shape = 'u8[512]{0}', space=smem, size = 0x200, scoped, tag = 'input window, operand 1, single buffered']
    #allocation5 [shape = 's32[1]{0}', space=sflag, size = 0x4, scoped, tag = 'scoped memory for simple_nn_forward.1']
    #allocation6 [shape = 'u8[8192]{0}', space=smem, size = 0x2000, scoped, tag = 'input window, operand 2, single buffered']
    #allocation7 [shape = 'u8[512]{0}', space=smem, size = 0x200, scoped, tag = 'input window, operand 3, single buffered']
    #allocation8 [shape = 's32[1]{0}', space=sflag, size = 0x4, scoped, tag = 'scoped memory for simple_nn_forward.1']
    %10 = vsyncpa [#allocation3], 0
    %11 = vsyncpa [#allocation5], 0
    %12 = vsyncpa [#allocation8], 0
    // Predicated region
    $region2: #{simple_nn_forward.1} parent=1 // pred_check
      _
    $region3: #{simple_nn_forward.1} parent=1 // pred_check_branch
      %14 = sbr.rel (0) target = $region5
    $region4: #{simple_nn_forward.1} parent=1 // pred_region
      %16 = vsyncadd [#allocation3], 0
      %s18 = sshll.u32 %s0, 4
      %s19 = int_to_ptr.vmem [resolvable:$true] %s18
      %21 = dma.vmem_to_smem %s19, 32, [#allocation2], [#allocation3]
    $region5: #{simple_nn_forward.1} parent=1 // pred_fallthru
      _
    // Predicated region
    $region6: #{simple_nn_forward.1} parent=1 // pred_check
      _
    $region7: #{simple_nn_forward.1} parent=1 // pred_check_branch
      %23 = sbr.rel (0) target = $region9
    $region8: #{simple_nn_forward.1} parent=1 // pred_region
      %25 = vsyncadd [#allocation5], 0
      %s27 = sshll.u32 %s1, 4
      %s28 = int_to_ptr.vmem [resolvable:$true] %s27
      %30 = dma.vmem_to_smem %s28, 16, [#allocation4], [#allocation5]
    $region9: #{simple_nn_forward.1} parent=1 // pred_fallthru
      _
    // Predicated region
    $region10: #{simple_nn_forward.1} parent=1 // pred_check
      _
    $region11: #{simple_nn_forward.1} parent=1 // pred_check_branch
      %32 = sbr.rel (0) target = $region13
    $region12: #{simple_nn_forward.1} parent=1 // pred_region
      %34 = vsyncadd [#allocation5], 0
      %s35 = sshll.u32 %s2, 4
      %s36 = int_to_ptr.vmem [resolvable:$true] %s35
      %41 = dma.vmem_to_smem %s36, 256, [#allocation6], [#allocation5], 128, 128, 8
    $region13: #{simple_nn_forward.1} parent=1 // pred_fallthru
      _
    // Predicated region
    $region14: #{simple_nn_forward.1} parent=1 // pred_check
      _
    $region15: #{simple_nn_forward.1} parent=1 // pred_check_branch
      %43 = sbr.rel (0) target = $region17
    $region16: #{simple_nn_forward.1} parent=1 // pred_region
      %45 = vsyncadd [#allocation8], 0
      %s47 = sshll.u32 %s3, 4
      %s48 = int_to_ptr.vmem [resolvable:$true] %s47
      %50 = dma.vmem_to_smem %s48, 16, [#allocation7], [#allocation8]
    $region17: #{simple_nn_forward.1} parent=1 // pred_fallthru
      _
    // Predicated region
    $region18: #{simple_nn_forward.1} parent=1 // pred_check
      _
    $region19: #{simple_nn_forward.1} parent=1 // pred_check_branch
      %52 = sbr.rel (0) target = $region21
    $region20: #{simple_nn_forward.1} parent=1 // pred_region
      _
    $region21: #{simple_nn_forward.1} parent=1 // pred_fallthru
      _
    // Predicated region
    $region22: #{simple_nn_forward.1} parent=1 // pred_check
      _
    $region23: #{simple_nn_forward.1} parent=1 // pred_check_branch
      %54 = sbr.rel (0) target = $region25
    $region24: #{simple_nn_forward.1} parent=1 // pred_region
      %56 = dma.done [#allocation3], 32
    $region25: #{simple_nn_forward.1} parent=1 // pred_fallthru
      _
    // Predicated region
    $region26: #{simple_nn_forward.1} parent=1 // pred_check
      _
    $region27: #{simple_nn_forward.1} parent=1 // pred_check_branch
      %58 = sbr.rel (0) target = $region29
    $region28: #{simple_nn_forward.1} parent=1 // pred_region
      %60 = dma.done [#allocation5], 16
    $region29: #{simple_nn_forward.1} parent=1 // pred_fallthru
      _
    // Predicated region
    $region30: #{simple_nn_forward.1} parent=1 // pred_check
      _
    $region31: #{simple_nn_forward.1} parent=1 // pred_check_branch
      %62 = sbr.rel (0) target = $region33
    $region32: #{simple_nn_forward.1} parent=1 // pred_region
      %64 = dma.done [#allocation5], 256
    $region33: #{simple_nn_forward.1} parent=1 // pred_fallthru
      _
    // Predicated region
    $region34: #{simple_nn_forward.1} parent=1 // pred_check
      _
    $region35: #{simple_nn_forward.1} parent=1 // pred_check_branch
      %66 = sbr.rel (0) target = $region37
    $region36: #{simple_nn_forward.1} parent=1 // pred_region
      %68 = dma.done [#allocation8], 16
    $region37: #{simple_nn_forward.1} parent=1 // pred_fallthru
      _
    %69 = sfence
    %v70 = vld [vmem:[%s4] sm:$0xff]
    %s71 = scalar_lea.vmem %s4, 8
    %v72 = vld [vmem:[%s71] sm:$0xff]
    %s73 = sld [smem:[#allocation7]]
    %v74 = vstv %s73
    %s75 = sld [smem:[#allocation7 + $0x1]]
    %v76 = vstv %s75
    %s77 = sld [smem:[#allocation2]]
    %v78 = vstv %s77
    %v79 = vmul.f32 %v78, %v70
    %s80 = sld [smem:[#allocation2 + $0x80]]
    %v81 = vstv %s80
    %v82 = vmul.f32 %v81, %v72
    %v83 = vadd.f32 %v79, %v82
    %s84 = sld [smem:[#allocation4]]
    %v85 = vstv %s84
    %v86 = vadd.f32 %v83, %v85
    %v87 = vmax.f32 %v86, 0.0
    %s88 = sld [smem:[#allocation6]]
    %v89 = vstv %s88
    %v90 = vmul.f32 %v89, %v87
    %v91 = vadd.f32 %v74, %v90
    %s92 = sld [smem:[#allocation6 + $0x1]]
    %v93 = vstv %s92
    %v94 = vmul.f32 %v93, %v87
    %v95 = vadd.f32 %v76, %v94
    %s96 = sld [smem:[#allocation2 + $0x1]]
    %v97 = vstv %s96
    %v98 = vmul.f32 %v97, %v70
    %s99 = sld [smem:[#allocation2 + $0x81]]
    %v100 = vstv %s99
    %v101 = vmul.f32 %v100, %v72
    %v102 = vadd.f32 %v98, %v101
    %s103 = sld [smem:[#allocation4 + $0x1]]
    %v104 = vstv %s103
    %v105 = vadd.f32 %v102, %v104
    %v106 = vmax.f32 %v105, 0.0
    %s107 = sld [smem:[#allocation6 + $0x80]]
    %v108 = vstv %s107
    %v109 = vmul.f32 %v108, %v106
    %v110 = vadd.f32 %v91, %v109
    %s111 = sld [smem:[#allocation6 + $0x81]]
    %v112 = vstv %s111
    %v113 = vmul.f32 %v112, %v106
    %v114 = vadd.f32 %v95, %v113
    %s115 = sld [smem:[#allocation2 + $0x2]]
    %v116 = vstv %s115
    %v117 = vmul.f32 %v116, %v70
    %s118 = sld [smem:[#allocation2 + $0x82]]
    %v119 = vstv %s118
    %v120 = vmul.f32 %v119, %v72
    %v121 = vadd.f32 %v117, %v120
    %s122 = sld [smem:[#allocation4 + $0x2]]
    %v123 = vstv %s122
    %v124 = vadd.f32 %v121, %v123
    %v125 = vmax.f32 %v124, 0.0
    %s126 = sld [smem:[#allocation6 + $0x100]]
    %v127 = vstv %s126
    %v128 = vmul.f32 %v127, %v125
    %v129 = vadd.f32 %v110, %v128
    %s130 = sld [smem:[#allocation6 + $0x101]]
    %v131 = vstv %s130
    %v132 = vmul.f32 %v131, %v125
    %v133 = vadd.f32 %v114, %v132
    %s134 = sld [smem:[#allocation2 + $0x3]]
    %v135 = vstv %s134
    %v136 = vmul.f32 %v135, %v70
    %s137 = sld [smem:[#allocation2 + $0x83]]
    %v138 = vstv %s137
    %v139 = vmul.f32 %v138, %v72
    %v140 = vadd.f32 %v136, %v139
    %s141 = sld [smem:[#allocation4 + $0x3]]
    %v142 = vstv %s141
    %v143 = vadd.f32 %v140, %v142
    %v144 = vmax.f32 %v143, 0.0
    %s145 = sld [smem:[#allocation6 + $0x180]]
    %v146 = vstv %s145
    %v147 = vmul.f32 %v146, %v144
    %v148 = vadd.f32 %v129, %v147
    %s149 = sld [smem:[#allocation6 + $0x181]]
    %v150 = vstv %s149
    %v151 = vmul.f32 %v150, %v144
    %v152 = vadd.f32 %v133, %v151
    %s153 = sld [smem:[#allocation2 + $0x4]]
    %v154 = vstv %s153
    %v155 = vmul.f32 %v154, %v70
    %s156 = sld [smem:[#allocation2 + $0x84]]
    %v157 = vstv %s156
    %v158 = vmul.f32 %v157, %v72
    %v159 = vadd.f32 %v155, %v158
    %s160 = sld [smem:[#allocation4 + $0x4]]
    %v161 = vstv %s160
    %v162 = vadd.f32 %v159, %v161
    %v163 = vmax.f32 %v162, 0.0
    %s164 = sld [smem:[#allocation6 + $0x200]]
    %v165 = vstv %s164
    %v166 = vmul.f32 %v165, %v163
    %v167 = vadd.f32 %v148, %v166
    %s168 = sld [smem:[#allocation6 + $0x201]]
    %v169 = vstv %s168
    %v170 = vmul.f32 %v169, %v163
    %v171 = vadd.f32 %v152, %v170
    %s172 = sld [smem:[#allocation2 + $0x5]]
    %v173 = vstv %s172
    %v174 = vmul.f32 %v173, %v70
    %s175 = sld [smem:[#allocation2 + $0x85]]
    %v176 = vstv %s175
    %v177 = vmul.f32 %v176, %v72
    %v178 = vadd.f32 %v174, %v177
    %s179 = sld [smem:[#allocation4 + $0x5]]
    %v180 = vstv %s179
    %v181 = vadd.f32 %v178, %v180
    %v182 = vmax.f32 %v181, 0.0
    %s183 = sld [smem:[#allocation6 + $0x280]]
    %v184 = vstv %s183
    %v185 = vmul.f32 %v184, %v182
    %v186 = vadd.f32 %v167, %v185
    %s187 = sld [smem:[#allocation6 + $0x281]]
    %v188 = vstv %s187
    %v189 = vmul.f32 %v188, %v182
    %v190 = vadd.f32 %v171, %v189
    %s191 = sld [smem:[#allocation2 + $0x6]]
    %v192 = vstv %s191
    %v193 = vmul.f32 %v192, %v70
    %s194 = sld [smem:[#allocation2 + $0x86]]
    %v195 = vstv %s194
    %v196 = vmul.f32 %v195, %v72
    %v197 = vadd.f32 %v193, %v196
    %s198 = sld [smem:[#allocation4 + $0x6]]
    %v199 = vstv %s198
    %v200 = vadd.f32 %v197, %v199
    %v201 = vmax.f32 %v200, 0.0
    %s202 = sld [smem:[#allocation6 + $0x300]]
    %v203 = vstv %s202
    %v204 = vmul.f32 %v203, %v201
    %v205 = vadd.f32 %v186, %v204
    %s206 = sld [smem:[#allocation6 + $0x301]]
    %v207 = vstv %s206
    %v208 = vmul.f32 %v207, %v201
    %v209 = vadd.f32 %v190, %v208
    %s210 = sld [smem:[#allocation2 + $0x7]]
    %v211 = vstv %s210
    %v212 = vmul.f32 %v211, %v70
    %s213 = sld [smem:[#allocation2 + $0x87]]
    %v214 = vstv %s213
    %v215 = vmul.f32 %v214, %v72
    %v216 = vadd.f32 %v212, %v215
    %s217 = sld [smem:[#allocation4 + $0x7]]
    %v218 = vstv %s217
    %v219 = vadd.f32 %v216, %v218
    %v220 = vmax.f32 %v219, 0.0
    %s221 = sld [smem:[#allocation6 + $0x380]]
    %v222 = vstv %s221
    %v223 = vmul.f32 %v222, %v220
    %v224 = vadd.f32 %v205, %v223
    %s225 = sld [smem:[#allocation6 + $0x381]]
    %v226 = vstv %s225
    %v227 = vmul.f32 %v226, %v220
    %v228 = vadd.f32 %v209, %v227
    %s229 = sld [smem:[#allocation2 + $0x8]]
    %v230 = vstv %s229
    %v231 = vmul.f32 %v230, %v70
    %s232 = sld [smem:[#allocation2 + $0x88]]
    %v233 = vstv %s232
    %v234 = vmul.f32 %v233, %v72
    %v235 = vadd.f32 %v231, %v234
    %s236 = sld [smem:[#allocation4 + $0x8]]
    %v237 = vstv %s236
    %v238 = vadd.f32 %v235, %v237
    %v239 = vmax.f32 %v238, 0.0
    %s240 = sld [smem:[#allocation6 + $0x400]]
    %v241 = vstv %s240
    %v242 = vmul.f32 %v241, %v239
    %v243 = vadd.f32 %v224, %v242
    %s244 = sld [smem:[#allocation6 + $0x401]]
    %v245 = vstv %s244
    %v246 = vmul.f32 %v245, %v239
    %v247 = vadd.f32 %v228, %v246
    %s248 = sld [smem:[#allocation2 + $0x9]]
    %v249 = vstv %s248
    %v250 = vmul.f32 %v249, %v70
    %s251 = sld [smem:[#allocation2 + $0x89]]
    %v252 = vstv %s251
    %v253 = vmul.f32 %v252, %v72
    %v254 = vadd.f32 %v250, %v253
    %s255 = sld [smem:[#allocation4 + $0x9]]
    %v256 = vstv %s255
    %v257 = vadd.f32 %v254, %v256
    %v258 = vmax.f32 %v257, 0.0
    %s259 = sld [smem:[#allocation6 + $0x480]]
    %v260 = vstv %s259
    %v261 = vmul.f32 %v260, %v258
    %v262 = vadd.f32 %v243, %v261
    %s263 = sld [smem:[#allocation6 + $0x481]]
    %v264 = vstv %s263
    %v265 = vmul.f32 %v264, %v258
    %v266 = vadd.f32 %v247, %v265
    %267 = vst [vmem:[%s5] sm:$0xff] %v262
    %s268 = scalar_lea.vmem %s5, 8
    %269 = vst [vmem:[%s268] sm:$0xff] %v266
    // Predicated region
    $region38: #{simple_nn_forward.1} parent=1 // pred_check
      _
    $region39: #{simple_nn_forward.1} parent=1 // pred_check_branch
      %271 = sbr.rel (0) target = $region41
    $region40: #{simple_nn_forward.1} parent=1 // pred_region
      _
    $region41: #{simple_nn_forward.1} parent=1 // pred_fallthru
      _
    // Predicated region
    $region42: #{simple_nn_forward.1} parent=1 // pred_check
      _
    $region43: #{simple_nn_forward.1} parent=1 // pred_check_branch
      %273 = sbr.rel (0) target = $region45
    $region44: #{simple_nn_forward.1} parent=1 // pred_region
      _
    $region45: #{simple_nn_forward.1} parent=1 // pred_fallthru
      _
    %274 = vsyncpa [#allocation3], 1
    %275 = vsyncpa [#allocation5], 1
    %276 = vsyncpa [#allocation8], 1

</llo_original>
